<compile_context>
chip_gen: v7x
topology: tpu7x:2x2x1
jax: 0.10.0
libtpu: 0.0.40
codegen_flags: <defaults>
</compile_context>

<pallas_src>
import functools
import math

import jax
import jax.numpy as jnp
from jax.experimental import pallas as pl
from jax.experimental.pallas import tpu as pltpu


def _round_up(x, m):
    return (x + m - 1) // m * m


def _pick_tile_rows(L, K, csub, n_images, budget_bytes=24 << 20):
    """Largest token-row tile R that divides L, keeps the bf16 sublane layout dense
    (R % 16 == 0, or R == L), fits a lane-padded double-buffered VMEM budget that is
    also v7x-safe, and leaves >= 2 grid steps when the batch alone cannot provide them."""
    lanes_in = _round_up(K, 128)
    lanes_out = _round_up(csub, 128)
    # 2 buffers for the streaming im2col block + 2 for the output block (bf16),
    # plus ~4 f32 epilogue temporaries of the output width.
    per_row = 2 * 2 * lanes_in + 2 * 2 * lanes_out + 4 * 4 * lanes_out
    max_rows = max(16, budget_bytes // per_row)
    valid = [d for d in range(1, L + 1) if L % d == 0 and (d % 16 == 0 or d == L)]
    cap = L // 2 if (n_images == 1 and any(d <= L // 2 for d in valid)) else L
    for pool in ([d for d in valid if d <= min(cap, max_rows)],
                 [d for d in valid if d <= max_rows],
                 valid):
        if pool:
            return max(pool)
    return L


def _partial_conv_kernel(cols_ref, w_ref, b_ref, out_ref, *,
                         cout, slide_winsize, act_gain, lrelu):
    # cols_ref: (1, R, K)     bf16  im2col rows (mask channel interleaved per tap)
    # w_ref   : (K, csub)     bf16  augmented weights (column `cout` counts the mask)
    # b_ref   : (1, csub)     f32   bias (zero in the mask / padding columns)
    # out_ref : (1, R, csub)  bf16  fused output: [:, :cout] = conv, [:, cout] = update_mask
    acc = jnp.dot(cols_ref[0], w_ref[...],
                  preferred_element_type=jnp.float32)          # one MXU pass, f32 result

    um = acc[:, cout:cout + 1]                                  # exact mask counts (0..k*k)
    um_c = jnp.clip(um, 0.0, 1.0)
    # exact reciprocal for parity with the PyTorch module; um==0 -> huge * 0 == 0, no NaN
    ratio = (slide_winsize * pl.reciprocal(um + 1e-8)) * um_c

    y = acc + b_ref[...]                                        # bias_act: bias add ...
    if lrelu:
        y = jnp.where(y >= 0.0, y, 0.2 * y) * act_gain          # ... lrelu, def_gain sqrt(2)
    res = y * ratio

    # Merge clamp(update_mask) into its column with one select, then a single bf16 store.
    lane = jax.lax.broadcasted_iota(jnp.int32, res.shape, 1)
    out_ref[0] = jnp.where(lane == cout, um_c, res).astype(out_ref.dtype)


def conv2d_layer_partial_tokens(x_tok, mask_tok, weight, bias, x_size, kernel_size, *,
                                activation="linear"):
    """Token-form Conv2dLayerPartial (as used inside BasicLayer).

    x_tok: (N, H*W, Cin), mask_tok: (N, H*W, 1), weight: (Cout, Cin, k, k), bias: (Cout,).
    Returns (out_tok (N, H*W, Cout) bf16, update_mask_tok (N, H*W, 1) bf16).
    """
    H, W = x_size
    N, L, Cin = x_tok.shape
    assert L == H * W, "token count must equal H*W"
    Cout = weight.shape[0]
    k = kernel_size
    assert k % 2 == 1, "only odd kernel sizes supported (padding = k//2 semantics)"
    assert activation in ("linear", "lrelu")
    p = k // 2
    cin1 = Cin + 1
    K = k * k * cin1
    csub = _round_up(Cout + 1, 16)                   # narrow bf16-sublane-friendly width
    weight_gain = 1.0 / math.sqrt(Cin * k * k)
    lrelu = activation == "lrelu"
    act_gain = math.sqrt(2.0) if lrelu else 1.0

    # --- glue (XLA): channels-last image + mask channel, zero-pad, im2col ---------------
    base = jnp.concatenate(
        [x_tok.reshape(N, H, W, Cin), mask_tok.reshape(N, H, W, 1)],
        axis=-1).astype(jnp.bfloat16)
    padded = jnp.pad(base, ((0, 0), (p, p), (p, p), (0, 0)))       # (N, H+2p, W+2p, Cin+1)
    cols = jnp.concatenate(
        [padded[:, ky:ky + H, kx:kx + W, :] for ky in range(k) for kx in range(k)],
        axis=-1).reshape(N, L, K)                                  # (N, H*W, k*k*(Cin+1))

    # Augmented weights: scaled conv taps + all-ones mask-count column; zero elsewhere
    # (so the padded columns of the fused output are exactly zero).
    w_hwio = jnp.transpose(weight, (2, 3, 1, 0)).astype(jnp.float32) * weight_gain
    w_aug = jnp.zeros((k, k, cin1, csub), jnp.float32)
    w_aug = w_aug.at[:, :, :Cin, :Cout].set(w_hwio).at[:, :, Cin, Cout].set(1.0)
    w_aug = w_aug.reshape(K, csub).astype(jnp.bfloat16)
    b_aug = jnp.zeros((1, csub), jnp.float32).at[0, :Cout].set(bias.astype(jnp.float32))

    R = _pick_tile_rows(L, K, csub, N)
    nt = L // R

    # Explicit VMEM budget from the lane-padded, double-buffered footprints
    # (v5e scoped default is only 16 MiB; cap at v7x's 64 MiB physical).
    lanes_in, lanes_out = _round_up(K, 128), _round_up(csub, 128)
    need = (2 * R * lanes_in * 2 + 2 * R * lanes_out * 2
            + _round_up(K, 16) * lanes_out * 2 + 8 * lanes_out * 4
            + 6 * R * lanes_out * 4)
    vmem_limit = int(min(64 << 20, max(32 << 20, 2 * need)))

    kernel = functools.partial(
        _partial_conv_kernel, cout=Cout, slide_winsize=float(k * k),
        act_gain=act_gain, lrelu=lrelu)

    out_aug = pl.pallas_call(
        kernel,
        grid=(N, nt),
        in_specs=[
            pl.BlockSpec((1, R, K), lambda n, t: (n, t, 0)),
            pl.BlockSpec((K, csub), lambda n, t: (0, 0)),     # resident (constant index)
            pl.BlockSpec((1, csub), lambda n, t: (0, 0)),     # resident (constant index)
        ],
        out_specs=pl.BlockSpec((1, R, csub), lambda n, t: (n, t, 0)),
        out_shape=jax.ShapeDtypeStruct((N, L, csub), jnp.bfloat16),
        compiler_params=pltpu.CompilerParams(
            dimension_semantics=("parallel", "parallel"),
            vmem_limit_bytes=vmem_limit),
    )(cols, w_aug, b_aug)

    out_tok = out_aug[:, :, :Cout]                 # token-form conv output (bf16)
    um_tok = out_aug[:, :, Cout:Cout + 1]          # token-form update_mask (exact 0/1)
    return out_tok, um_tok


def _reference_tokens(x_tok, mask_tok, weight, bias, x_size, k, activation):
    """Pure-JAX reference mirroring the PyTorch module (inputs/weights quantized to bf16
    exactly as the kernel does, so the comparison isolates kernel numerics)."""
    H, W = x_size
    N, L, Cin = x_tok.shape
    Cout = weight.shape[0]
    p = k // 2
    wg = 1.0 / math.sqrt(Cin * k * k)

    x = jnp.transpose(x_tok.reshape(N, H, W, Cin), (0, 3, 1, 2))
    m = jnp.transpose(mask_tok.reshape(N, H, W, 1), (0, 3, 1, 2))
    xq = x.astype(jnp.bfloat16).astype(jnp.float32)
    mq = m.astype(jnp.bfloat16).astype(jnp.float32)           # 0/1 -> exact
    wq = (weight.astype(jnp.float32) * wg).astype(jnp.bfloat16).astype(jnp.float32)

    conv = jax.lax.conv_general_dilated(
        xq, wq, window_strides=(1, 1), padding=[(p, p), (p, p)],
        dimension_numbers=("NCHW", "OIHW", "NCHW"))
    conv = conv + bias.reshape(1, Cout, 1, 1).astype(jnp.float32)
    if activation == "lrelu":
        conv = jnp.where(conv >= 0.0, conv, 0.2 * conv) * math.sqrt(2.0)

    ones_w = jnp.ones((1, 1, k, k), jnp.float32)
    um = jax.lax.conv_general_dilated(
        mq, ones_w, window_strides=(1, 1), padding=[(p, p), (p, p)],
        dimension_numbers=("NCHW", "OIHW", "NCHW"))
    mask_ratio = (k * k) / (um + 1e-8)
    umc = jnp.clip(um, 0.0, 1.0)
    out = conv * (mask_ratio * umc)

    out_tok = jnp.transpose(out, (0, 2, 3, 1)).reshape(N, L, Cout)
    um_tok = jnp.transpose(umc, (0, 2, 3, 1)).reshape(N, L, 1)
    return out_tok, um_tok


if __name__ == "__main__":
    N, Cin, Cout, H, W, k = 2, 4, 8, 16, 16, 3

    key = jax.random.PRNGKey(0)
    kx, km, kw, kb = jax.random.split(key, 4)
    # Token-form inputs, as produced inside BasicLayer (x: (B, H*W, C), mask: (B, H*W, 1)).
    x_tok = jax.random.normal(kx, (N, H * W, Cin), dtype=jnp.float32)
    mask_tok = (jax.random.uniform(km, (N, H * W, 1)) > 0.4).astype(jnp.float32)
    # weight ~ randn (as torch.randn in __init__); small random bias exercises the bias path
    weight = jax.random.normal(kw, (Cout, Cin, k, k), dtype=jnp.float32)
    bias = 0.1 * jax.random.normal(kb, (Cout,), dtype=jnp.float32)

    # BasicLayer instantiates Conv2dLayerPartial with activation='lrelu'; also check 'linear'.
    for act in ("lrelu", "linear"):
        out_tok, um_tok = conv2d_layer_partial_tokens(
            x_tok, mask_tok, weight, bias, (H, W), k, activation=act)
        out_tok = jax.block_until_ready(out_tok)
        um_tok = jax.block_until_ready(um_tok)

        ref_out, ref_um = _reference_tokens(x_tok, mask_tok, weight, bias, (H, W), k, act)
        assert out_tok.shape == (N, H * W, Cout) and um_tok.shape == (N, H * W, 1)
        # update_mask is clamp(integer counts) -> exact even through bf16
        assert jnp.allclose(um_tok.astype(jnp.float32), ref_um, atol=1e-6), \
            f"mask mismatch ({act})"
        # bf16 MXU inputs are shared with the reference; the remaining delta is the
        # accumulation order plus the final bf16 output cast -> modest tolerance.
        assert jnp.allclose(out_tok.astype(jnp.float32), ref_out, rtol=2e-2, atol=2e-2), \
            f"output mismatch ({act})"

    print("KERNEL_OK")
</pallas_src>

<mosaic_0001>
module attributes {stable_mosaic.version = 11 : i64} {
  func.func @_partial_conv_kernel(%arg0: i32, %arg1: i32, %arg2: memref<1x256x45xbf16, #tpu.memory_space<vmem>>, %arg3: memref<45x16xbf16, #tpu.memory_space<vmem>>, %arg4: memref<1x16xf32, #tpu.memory_space<vmem>>, %arg5: memref<1x256x16xbf16, #tpu.memory_space<vmem>>) attributes {dimension_semantics = [#tpu.dimension_semantics<parallel>, #tpu.dimension_semantics<parallel>], iteration_bounds = array<i64: 2, 1>, scalar_prefetch = 0 : i64, scratch_operands = 0 : i64, tpu.core_type = #tpu.core_type<tc>, window_params = [{transform_indices = @transform_0, window_bounds = array<i64: 1, 256, 45>}, {pipeline_mode = #tpu.pipeline_mode<synchronous>, transform_indices = @transform_1, window_bounds = array<i64: 45, 16>}, {pipeline_mode = #tpu.pipeline_mode<synchronous>, transform_indices = @transform_2, window_bounds = array<i64: 1, 16>}, {transform_indices = @transform_3, window_bounds = array<i64: 1, 256, 16>}]} {
    %c0 = arith.constant 0 : index
    %c0_0 = arith.constant 0 : index
    %c0_1 = arith.constant 0 : index
    %0 = vector.load %arg2[%c0, %c0_0, %c0_1] : memref<1x256x45xbf16, #tpu.memory_space<vmem>>, vector<1x256x45xbf16>
    %1 = vector.shape_cast %0 : vector<1x256x45xbf16> to vector<256x45xbf16>
    %c0_2 = arith.constant 0 : index
    %c0_3 = arith.constant 0 : index
    %2 = vector.load %arg3[%c0_2, %c0_3] : memref<45x16xbf16, #tpu.memory_space<vmem>>, vector<45x16xbf16>
    %cst = arith.constant dense<0.000000e+00> : vector<256x16xf32>
    %3 = tpu.matmul %1, %2, %cst {dimension_numbers = #tpu.dot_dimension_numbers<[1], [0], [0], [1], [0, 0, 1, 1], [], []>} : vector<256x45xbf16>, vector<45x16xbf16>, vector<256x16xf32> -> vector<256x16xf32>
    %4 = vector.extract_strided_slice %3 {offsets = [0, 8], sizes = [256, 1], strides = [1, 1]} : vector<256x16xf32> to vector<256x1xf32>
    %cst_4 = arith.constant 0.000000e+00 : f32
    %cst_5 = arith.constant 1.000000e+00 : f32
    %5 = vector.broadcast %cst_4 : f32 to vector<256x1xf32>
    %6 = arith.maximumf %5, %4 : vector<256x1xf32>
    %7 = vector.broadcast %cst_5 : f32 to vector<256x1xf32>
    %8 = arith.minimumf %7, %6 : vector<256x1xf32>
    %cst_6 = arith.constant 9.99999993E-9 : f32
    %9 = vector.broadcast %cst_6 : f32 to vector<256x1xf32>
    %10 = arith.addf %4, %9 : vector<256x1xf32>
    %11 = tpu.reciprocal %10 : vector<256x1xf32> -> vector<256x1xf32>
    %cst_7 = arith.constant 9.000000e+00 : f32
    %12 = vector.broadcast %cst_7 : f32 to vector<256x1xf32>
    %13 = arith.mulf %12, %11 : vector<256x1xf32>
    %14 = arith.mulf %13, %8 : vector<256x1xf32>
    %c0_8 = arith.constant 0 : index
    %c0_9 = arith.constant 0 : index
    %15 = vector.load %arg4[%c0_8, %c0_9] : memref<1x16xf32, #tpu.memory_space<vmem>>, vector<1x16xf32>
    %16 = vector.broadcast %15 : vector<1x16xf32> to vector<256x16xf32>
    %17 = arith.addf %3, %16 : vector<256x16xf32>
    %cst_10 = arith.constant 0.000000e+00 : f32
    %18 = vector.broadcast %cst_10 : f32 to vector<256x16xf32>
    %19 = arith.cmpf oge, %17, %18 : vector<256x16xf32>
    %cst_11 = arith.constant 2.000000e-01 : f32
    %20 = vector.broadcast %cst_11 : f32 to vector<256x16xf32>
    %21 = arith.mulf %20, %17 : vector<256x16xf32>
    %22 = arith.select %19, %17, %21 : vector<256x16xi1>, vector<256x16xf32>
    %cst_12 = arith.constant 1.41421354 : f32
    %23 = vector.broadcast %cst_12 : f32 to vector<256x16xf32>
    %24 = arith.mulf %22, %23 : vector<256x16xf32>
    %25 = vector.broadcast %14 : vector<256x1xf32> to vector<256x16xf32>
    %26 = arith.mulf %24, %25 : vector<256x16xf32>
    %27 = tpu.iota {dimensions = array<i32: 1>} : vector<256x16xi32>
    %c8_i32 = arith.constant 8 : i32
    %28 = vector.broadcast %c8_i32 : i32 to vector<256x16xi32>
    %29 = arith.cmpi eq, %27, %28 : vector<256x16xi32>
    %30 = vector.shape_cast %8 : vector<256x1xf32> to vector<256x1xf32>
    %31 = vector.broadcast %30 : vector<256x1xf32> to vector<256x16xf32>
    %32 = arith.select %29, %31, %26 : vector<256x16xi1>, vector<256x16xf32>
    %33 = arith.truncf %32 : vector<256x16xf32> to vector<256x16xbf16>
    %c0_13 = arith.constant 0 : index
    %c0_14 = arith.constant 0 : index
    %c0_15 = arith.constant 0 : index
    %34 = vector.load %arg5[%c0_13, %c0_14, %c0_15] : memref<1x256x16xbf16, #tpu.memory_space<vmem>>, vector<1x256x16xbf16>
    %35 = vector.shape_cast %34 : vector<1x256x16xbf16> to vector<256x16xbf16>
    %36 = vector.shape_cast %33 : vector<256x16xbf16> to vector<1x256x16xbf16>
    tpu.vector_store %arg5[%c0_13, %c0_14, %c0_15], %36 {strides = array<i32>} : memref<1x256x16xbf16, #tpu.memory_space<vmem>>, vector<1x256x16xbf16>,
    return
  }
  func.func @transform_0(%arg0: i32, %arg1: i32) -> (i32, i32, i32) {
    %c0_i32 = arith.constant 0 : i32
    %c0_i32_0 = arith.constant 0 : i32
    return %arg0, %arg1, %c0_i32 : i32, i32, i32
  }
  func.func @transform_1(%arg0: i32, %arg1: i32) -> (i32, i32) {
    %c0_i32 = arith.constant 0 : i32
    %c0_i32_0 = arith.constant 0 : i32
    %c0_i32_1 = arith.constant 0 : i32
    return %c0_i32, %c0_i32_0 : i32, i32
  }
  func.func @transform_2(%arg0: i32, %arg1: i32) -> (i32, i32) {
    %c0_i32 = arith.constant 0 : i32
    %c0_i32_0 = arith.constant 0 : i32
    %c0_i32_1 = arith.constant 0 : i32
    return %c0_i32, %c0_i32_0 : i32, i32
  }
  func.func @transform_3(%arg0: i32, %arg1: i32) -> (i32, i32, i32) {
    %c0_i32 = arith.constant 0 : i32
    %c0_i32_0 = arith.constant 0 : i32
    return %arg0, %arg1, %c0_i32 : i32, i32, i32
  }
}

</mosaic_0001>

<llo_original>
// kernel: tpu_custom_call.1
$region0: #{tpu_custom_call.1}
  #allocation0 [shape = 'u32[]', space=smem, size = 0x4, offset = 0x4, fixed_abs, tag = 'smem constant byte address 0x4 - core index']
  #allocation1 [shape = 'u32[144,128]{1,0:T(1,128)}', space=vmem, size = 0x12000, scoped, tag = 'internal scratch']
  %s0 = inlined_call_operand.vmem [shape: bf16[2,256,45], index: 0, kind: input, shape index: {}]
  %s1 = inlined_call_operand.vmem [shape: bf16[45,16], index: 1, kind: input, shape index: {}]
  %s2 = inlined_call_operand.vmem [shape: f32[1,16], index: 2, kind: input, shape index: {}]
  %s3 = inlined_call_operand.vmem [shape: bf16[2,256,16], index: 3, kind: output, shape index: {}]
  %s4 = sld [smem:[#allocation0]]
  $region45: #{tpu_custom_call.1} parent=0
    _
  %s6 = ssub.s32 1, %s4
  %s7 = scalar_select 0, %s6, %s4
  loop: start=0, step=1, limit=4
  $region2: #{tpu_custom_call.1} parent=0 // loop_pre_header
    _
  $region3: #{tpu_custom_call.1} parent=0 // loop_header
    %s9 = sphi 0, %s13
    %p10 = scmp.ge.s32.totalorder %s9, 4
    %s16 = sphi 0, %s28
    %s17 = sphi 0, %s24
    %s18 = sphi 0, %s16
    %s19 = sphi 0, %s17
    %s20 = sphi 0, %s18
    %s21 = sphi 0, %s19
    %s33 = sphi 0, %s35
    %s36 = sphi 0, %s33
    %s37 = sphi 0, %s36
    %s53 = sphi 0, %s37
    %s57 = sphi 0, %s57
    %s59 = sphi 0, %s57
    %s60 = sphi 0, %s59
    %s74 = sphi 0, %s60
    %s78 = sphi 0, %s78
    %s80 = sphi 0, %s78
    %s81 = sphi 0, %s80
    %s95 = sphi 0, %s81
    %s103 = sphi 0, %s105
    %s106 = sphi 0, %s103
    %s107 = sphi 0, %s106
    %s123 = sphi 0, %s107
  $region4: #{tpu_custom_call.1} parent=0 // loop_header_branch
    %12 = sbr.rel (%p10) target = $region8
  $region5: #{tpu_custom_call.1} parent=0 // loop_body
    %s14 = ssub.s32 %s9, 1
    %s15 = ssub.s32 %s9, 2
    %s22 = sadd.s32 1, %s17
    %p23 = scmp.ge.s32.totalorder %s22, 1
    %s24 = scalar_select %p23, 0, %s22
    %s25 = sadd.s32 1, %s16
    %s26 = scalar_select %p23, %s25, %s16
    %p27 = scmp.ge.s32.totalorder %s26, 2
    %s28 = scalar_select %p27, 0, %s26
    %s29 = ssub.s32 %s16, %s28
    %s30 = ssub.s32 %s17, %s24
    %s31 = sor.u32 %s29, %s30
    %p32 = scmp.eq.s32.totalorder %s31, 0
    %s34 = sadd.s32 %s33, 1
    %s35 = scalar_select %p32, %s33, %s34
    %p38 = pneg %p32
    %p39 = scmp.eq.s32.totalorder %s9, 1
    %p40 = por %p38, %p39
    %p41 = scmp.ne.s32.totalorder %s33, %s36
    %p42 = scmp.eq.s32.totalorder %s9, 0
    %p43 = por %p41, %p42
    %p44 = scmp.ne.s32.totalorder %s33, %s36
    %p45 = scmp.eq.s32.totalorder %s14, 1
    %p46 = por %p44, %p45
    %p47 = scmp.ne.s32.totalorder %s36, %s37
    %p48 = scmp.eq.s32.totalorder %s14, 0
    %p49 = por %p47, %p48
    %p50 = scmp.ne.s32.totalorder %s36, %s37
    %p51 = scmp.eq.s32.totalorder %s15, 1
    %p52 = por %p50, %p51
    %p54 = scmp.ne.s32.totalorder %s37, %s53
    %p55 = scmp.eq.s32.totalorder %s15, 0
    %p56 = por %p54, %p55
    %s58 = sadd.s32 %s57, 1
    %p61 = scmp.eq.s32.totalorder %s9, 1
    %p62 = scmp.ne.s32.totalorder %s57, %s59
    %p63 = scmp.eq.s32.totalorder %s9, 0
    %p64 = por %p62, %p63
    %p65 = scmp.ne.s32.totalorder %s57, %s59
    %p66 = scmp.eq.s32.totalorder %s14, 1
    %p67 = por %p65, %p66
    %p68 = scmp.ne.s32.totalorder %s59, %s60
    %p69 = scmp.eq.s32.totalorder %s14, 0
    %p70 = por %p68, %p69
    %p71 = scmp.ne.s32.totalorder %s59, %s60
    %p72 = scmp.eq.s32.totalorder %s15, 1
    %p73 = por %p71, %p72
    %p75 = scmp.ne.s32.totalorder %s60, %s74
    %p76 = scmp.eq.s32.totalorder %s15, 0
    %p77 = por %p75, %p76
    %s79 = sadd.s32 %s78, 1
    %p82 = scmp.eq.s32.totalorder %s9, 1
    %p83 = scmp.ne.s32.totalorder %s78, %s80
    %p84 = scmp.eq.s32.totalorder %s9, 0
    %p85 = por %p83, %p84
    %p86 = scmp.ne.s32.totalorder %s78, %s80
    %p87 = scmp.eq.s32.totalorder %s14, 1
    %p88 = por %p86, %p87
    %p89 = scmp.ne.s32.totalorder %s80, %s81
    %p90 = scmp.eq.s32.totalorder %s14, 0
    %p91 = por %p89, %p90
    %p92 = scmp.ne.s32.totalorder %s80, %s81
    %p93 = scmp.eq.s32.totalorder %s15, 1
    %p94 = por %p92, %p93
    %p96 = scmp.ne.s32.totalorder %s81, %s95
    %p97 = scmp.eq.s32.totalorder %s15, 0
    %p98 = por %p96, %p97
    %s99 = ssub.s32 %s16, %s28
    %s100 = ssub.s32 %s17, %s24
    %s101 = sor.u32 %s99, %s100
    %p102 = scmp.eq.s32.totalorder %s101, 0
    %s104 = sadd.s32 %s103, 1
    %s105 = scalar_select %p102, %s103, %s104
    %p108 = pneg %p102
    %p109 = scmp.eq.s32.totalorder %s9, 1
    %p110 = por %p108, %p109
    %p111 = scmp.ne.s32.totalorder %s103, %s106
    %p112 = scmp.eq.s32.totalorder %s9, 0
    %p113 = por %p111, %p112
    %p114 = scmp.ne.s32.totalorder %s103, %s106
    %p115 = scmp.eq.s32.totalorder %s14, 1
    %p116 = por %p114, %p115
    %p117 = scmp.ne.s32.totalorder %s106, %s107
    %p118 = scmp.eq.s32.totalorder %s14, 0
    %p119 = por %p117, %p118
    %p120 = scmp.ne.s32.totalorder %s106, %s107
    %p121 = scmp.eq.s32.totalorder %s15, 1
    %p122 = por %p120, %p121
    %p124 = scmp.ne.s32.totalorder %s107, %s123
    %p125 = scmp.eq.s32.totalorder %s15, 0
    %p126 = por %p124, %p125
    %p127 = scmp.le.s32.totalorder 1, %s9
    %p128 = scmp.lt.s32.totalorder %s9, 3
    %p129 = pnand %p127, %p128
    %p130 = pneg %p129
    // Predicated region
    $region9: #{tpu_custom_call.1} parent=5 // pred_check
      _
    $region10: #{tpu_custom_call.1} parent=5 // pred_check_branch
      %132 = sbr.rel (%p129) target = $region12
    $region11: #{tpu_custom_call.1} parent=5 // pred_region
      %s133 = ssub.s32 %s9, 1
      // Predicated region
      $region13: #{tpu_custom_call.1} parent=11 // pred_check
        %p134 = pneg %p70
      $region14: #{tpu_custom_call.1} parent=11 // pred_check_branch
        %136 = sbr.rel (%p134) target = $region16
      $region15: #{tpu_custom_call.1} parent=11 // pred_region
        _
      $region16: #{tpu_custom_call.1} parent=11 // pred_fallthru
        _
      // Predicated region
      $region17: #{tpu_custom_call.1} parent=11 // pred_check
        %p137 = pneg %p91
      $region18: #{tpu_custom_call.1} parent=11 // pred_check_branch
        %139 = sbr.rel (%p137) target = $region20
      $region19: #{tpu_custom_call.1} parent=11 // pred_region
        _
      $region20: #{tpu_custom_call.1} parent=11 // pred_fallthru
        _
    $region12: #{tpu_custom_call.1} parent=5 // pred_fallthru
      _
    %p140 = scmp.lt.s32.totalorder %s9, 2
    // Predicated region
    $region21: #{tpu_custom_call.1} parent=5 // pred_check
      %p141 = pneg %p140
    $region22: #{tpu_custom_call.1} parent=5 // pred_check_branch
      %143 = sbr.rel (%p141) target = $region24
    $region23: #{tpu_custom_call.1} parent=5 // pred_region
      // Predicated region
      $region25: #{tpu_custom_call.1} parent=23 // pred_check
        %p144 = pneg %p43
      $region26: #{tpu_custom_call.1} parent=23 // pred_check_branch
        %146 = sbr.rel (%p144) target = $region28
      $region27: #{tpu_custom_call.1} parent=23 // pred_region
        %s147 = smul.u32 32, %s17
        %p148 = scmp.lt.s32.totalorder %s16, 1
        %s149 = scalar_select %p148, %s16, 1
        %p150 = scmp.lt.s32.totalorder %s147, 31
        %s151 = scalar_select %p150, %s147, 31
        %s152 = smul.addr %s149, 32
        %s153 = sadd.s32 %s151, %s152
        %s154 = smul.addr %s153, 4
        %s155 = scalar_lea.vmem %s0, %s154
        %s156 = smul.u32 32, %s17
      $region28: #{tpu_custom_call.1} parent=23 // pred_fallthru
        _
    $region24: #{tpu_custom_call.1} parent=5 // pred_fallthru
      _
    %p157 = scmp.le.s32.totalorder 1, %s9
    %p158 = scmp.lt.s32.totalorder %s9, 3
    %p159 = pnand %p157, %p158
    %p160 = pneg %p159
    // Predicated region
    $region29: #{tpu_custom_call.1} parent=5 // pred_check
      _
    $region30: #{tpu_custom_call.1} parent=5 // pred_check_branch
      %162 = sbr.rel (%p159) target = $region32
    $region31: #{tpu_custom_call.1} parent=5 // pred_region
      %s163 = ssub.s32 %s9, 1
      %s164 = smul.u32 32, %s19
      %p165 = scmp.lt.s32.totalorder %s18, 1
      %s166 = scalar_select %p165, %s18, 1
      %p167 = scmp.lt.s32.totalorder %s164, 31
      %s168 = scalar_select %p167, %s164, 31
      %s169 = smul.addr %s166, 32
      %s170 = sadd.s32 %s168, %s169
      %s171 = smul.addr %s170, 4
      %s172 = scalar_lea.vmem %s0, %s171
      %p173 = pneg %p49
      %p174 = pneg %p46
      %p175 = pneg %p70
      %p176 = pneg %p67
      %p177 = pneg %p91
      %p178 = pneg %p88
      %p179 = pneg %p119
      %p180 = pneg %p116
      %s181 = smul.u32 32, %s19
      %p182 = scmp.lt.s32.totalorder %s18, 1
      %s183 = scalar_select %p182, %s18, 1
      %p184 = scmp.lt.s32.totalorder %s181, 31
      %s185 = scalar_select %p184, %s181, 31
      %s186 = smul.addr %s183, 32
      %s187 = sadd.s32 %s185, %s186
      %s188 = smul.addr %s187, 4
      %s189 = scalar_lea.vmem %s3, %s188
      %s190 = smul.u32 32, %s19
      %p191 = scmp.lt.s32.totalorder %s18, 1
      %s192 = scalar_select %p191, %s18, 1
      %p193 = scmp.lt.s32.totalorder %s190, 31
      %s194 = scalar_select %p193, %s190, 31
      %s195 = smul.addr %s192, 32
      %s196 = sadd.s32 %s194, %s195
      %s197 = smul.addr %s196, 4
      %s198 = scalar_lea.vmem %s0, %s197
      %s199 = smul.u32 32, %s19
      %s200 = smul.u32 32, %s19
      %p201 = scmp.lt.s32.totalorder %s18, 1
      %s202 = scalar_select %p201, %s18, 1
      %p203 = scmp.lt.s32.totalorder %s200, 31
      %s204 = scalar_select %p203, %s200, 31
      %s205 = smul.addr %s202, 32
      %s206 = sadd.s32 %s204, %s205
      %s207 = smul.addr %s206, 4
      %s208 = scalar_lea.vmem %s3, %s207
      %s209 = smul.u32 32, %s19
      %v211 = vld [vmem:[%s198] sm:$0xf]
      %v212 = vld [vmem:[%s198 + $0x4] sm:$0xf]
      %v213 = vld [vmem:[%s198 + $0x8] sm:$0xf]
      %v214 = vld [vmem:[%s198 + $0xc] sm:$0xf]
      %v215 = vld [vmem:[%s198 + $0x10] sm:$0xf]
      %v216 = vld [vmem:[%s198 + $0x14] sm:$0xf]
      %v217 = vld [vmem:[%s198 + $0x18] sm:$0xf]
      %v218 = vld [vmem:[%s198 + $0x1c] sm:$0xf]
      %v219 = vld [vmem:[%s198 + $0x20] sm:$0xf]
      %v220 = vld [vmem:[%s198 + $0x24] sm:$0xf]
      %v221 = vld [vmem:[%s198 + $0x28] sm:$0xf]
      %v222 = vld [vmem:[%s198 + $0x2c] sm:$0xf]
      %v223 = vld [vmem:[%s198 + $0x30] sm:$0xf]
      %v224 = vld [vmem:[%s198 + $0x34] sm:$0xf]
      %v225 = vld [vmem:[%s198 + $0x38] sm:$0xf]
      %v226 = vld [vmem:[%s198 + $0x3c] sm:$0xf]
      %v227 = vld [vmem:[%s198 + $0x40] sm:$0xf]
      %v228 = vld [vmem:[%s198 + $0x44] sm:$0xf]
      %v229 = vld [vmem:[%s198 + $0x48] sm:$0xf]
      %v230 = vld [vmem:[%s198 + $0x4c] sm:$0xf]
      %v231 = vld [vmem:[%s198 + $0x50] sm:$0xf]
      %v232 = vld [vmem:[%s198 + $0x54] sm:$0xf]
      %v233 = vld [vmem:[%s198 + $0x58] sm:$0xf]
      %v234 = vld [vmem:[%s198 + $0x5c] sm:$0xf]
      %v235 = vld [vmem:[%s198 + $0x60] sm:$0xf]
      %v236 = vld [vmem:[%s198 + $0x64] sm:$0xf]
      %v237 = vld [vmem:[%s198 + $0x68] sm:$0xf]
      %v238 = vld [vmem:[%s198 + $0x6c] sm:$0xf]
      %v239 = vld [vmem:[%s198 + $0x70] sm:$0xf]
      %v240 = vld [vmem:[%s198 + $0x74] sm:$0xf]
      %v241 = vld [vmem:[%s198 + $0x78] sm:$0xf]
      %v242 = vld [vmem:[%s198 + $0x7c] sm:$0xf]
      %v243 = vld [vmem:[%s1] sm:$0xf]
      %v244 = vld [vmem:[%s1 + $0x4] sm:$0xf]
      %v245 = vld [vmem:[%s1 + $0x8] sm:$0xf]
      %v246 = vld [vmem:[%s1 + $0xc] sm:$0xf]
      %v247 = vld [vmem:[%s1 + $0x10] sm:$0xf]
      %v248 = vld [vmem:[%s1 + $0x14] sm:$0x7]
      %v281 = vunpack.c.l.b16 %v211
      %v282 = vunpack.c.l.b16 %v212
      %v283 = vunpack.c.l.b16 %v213
      %v284 = vunpack.c.l.b16 %v214
      %v285 = vunpack.c.l.b16 %v215
      %v286 = vunpack.c.l.b16 %v216
      %v287 = vunpack.c.l.b16 %v217
      %v288 = vunpack.c.l.b16 %v218
      %v289 = vunpack.c.l.b16 %v219
      %v290 = vunpack.c.l.b16 %v220
      %v291 = vunpack.c.l.b16 %v221
      %v292 = vunpack.c.l.b16 %v222
      %v293 = vunpack.c.l.b16 %v223
      %v294 = vunpack.c.l.b16 %v224
      %v295 = vunpack.c.l.b16 %v225
      %v296 = vunpack.c.l.b16 %v226
      %v297 = vunpack.c.l.b16 %v227
      %v298 = vunpack.c.l.b16 %v228
      %v299 = vunpack.c.l.b16 %v229
      %v300 = vunpack.c.l.b16 %v230
      %v301 = vunpack.c.l.b16 %v231
      %v302 = vunpack.c.l.b16 %v232
      %v303 = vunpack.c.l.b16 %v233
      %v304 = vunpack.c.l.b16 %v234
      %v305 = vunpack.c.l.b16 %v235
      %v306 = vunpack.c.l.b16 %v236
      %v307 = vunpack.c.l.b16 %v237
      %v308 = vunpack.c.l.b16 %v238
      %v309 = vunpack.c.l.b16 %v239
      %v310 = vunpack.c.l.b16 %v240
      %v311 = vunpack.c.l.b16 %v241
      %v312 = vunpack.c.l.b16 %v242
      %v313 = vpack.c.b16 %v282, %v281
      %v314 = vpack.c.b16 %v284, %v283
      %v315 = vpack.c.b16 %v286, %v285
      %v316 = vpack.c.b16 %v288, %v287
      %v317 = vpack.c.b16 %v290, %v289
      %v318 = vpack.c.b16 %v292, %v291
      %v319 = vpack.c.b16 %v294, %v293
      %v320 = vpack.c.b16 %v296, %v295
      %v321 = vpack.c.b16 %v298, %v297
      %v322 = vpack.c.b16 %v300, %v299
      %v323 = vpack.c.b16 %v302, %v301
      %v324 = vpack.c.b16 %v304, %v303
      %v325 = vpack.c.b16 %v306, %v305
      %v326 = vpack.c.b16 %v308, %v307
      %v327 = vpack.c.b16 %v310, %v309
      %v328 = vpack.c.b16 %v312, %v311
      %v335 = vunpack.c.l.b16 %v243
      %v336 = vunpack.c.l.b16 %v244
      %v337 = vunpack.c.l.b16 %v245
      %v338 = vunpack.c.l.b16 %v246
      %v339 = vunpack.c.l.b16 %v247
      %v340 = vunpack.c.l.b16 %v248
      %v341 = vpack.c.b16 %v336, %v335
      %v342 = vpack.c.b16 %v338, %v337
      %v343 = vpack.c.b16 %v340, %v339
      %vm346 = vcmask 367616
      %v348 = vsel %vm346, %v313, 0
      %v351 = vsel %vm346, %v314, 0
      %v354 = vsel %vm346, %v315, 0
      %v357 = vsel %vm346, %v316, 0
      %v360 = vsel %vm346, %v317, 0
      %v363 = vsel %vm346, %v318, 0
      %v366 = vsel %vm346, %v319, 0
      %v369 = vsel %vm346, %v320, 0
      %v372 = vsel %vm346, %v321, 0
      %v375 = vsel %vm346, %v322, 0
      %v378 = vsel %vm346, %v323, 0
      %v381 = vsel %vm346, %v324, 0
      %v384 = vsel %vm346, %v325, 0
      %v387 = vsel %vm346, %v326, 0
      %v390 = vsel %vm346, %v327, 0
      %v393 = vsel %vm346, %v328, 0
      %vm395 = vcmask 1045504
      %vm396 = vcmask 1046528
      %v397 = vsel %vm395, 4294967295, 65535
      %v398 = vsel %vm396, %v397, 0
      %v400 = vand.u32 %v343, %v398
      %402 = vmatprep.subr.bf16.mxu0 0
      %403 = vmatpush1.bf16.msra.mxu0 %v341
      %404 = vmatprep.subr.bf16.mxu0 0
      %405 = vmatpush1.bf16.msra.mxu0 %v342
      %406 = vmatprep.subr.bf16.mxu0 0
      %407 = vmatpush1.bf16.msra.mxu0 %v400
      %408 = vmatprep.subr.bf16.mxu0 0
      %409 = vmatpush1.bf16.msra.mxu0 0
      %410 = vmatprep.subr.bf16.mxu0 0
      %411 = vmatpush1.bf16.msra.mxu0 0
      %412 = vmatprep.subr.bf16.mxu0 0
      %413 = vmatpush1.bf16.msra.mxu0 0
      %414 = vmatprep.subr.bf16.mxu0 0
      %415 = vmatpush1.bf16.msra.mxu0 0
      %416 = vmatprep.subr.bf16.mxu0 0
      %417 = vmatpush1.bf16.msra.mxu0 0
      %418 = vmatprep.subr.bf16.mxu0 0
      %419 = vmatpush1.bf16.msra.mxu0 0
      %420 = vmatprep.subr.bf16.mxu0 0
      %421 = vmatpush1.bf16.msra.mxu0 0
      %422 = vmatprep.subr.bf16.mxu0 0
      %423 = vmatpush1.bf16.msra.mxu0 0
      %424 = vmatprep.subr.bf16.mxu0 0
      %425 = vmatpush1.bf16.msra.mxu0 0
      %426 = vmatprep.subr.bf16.mxu0 0
      %427 = vmatpush1.bf16.msra.mxu0 0
      %428 = vmatprep.subr.bf16.mxu0 0
      %429 = vmatpush1.bf16.msra.mxu0 0
      %430 = vmatprep.subr.bf16.mxu0 0
      %431 = vmatpush1.bf16.msra.mxu0 0
      %432 = vmatprep.subr.bf16.mxu0 0
      %433 = vmatpush1.bf16.msra.mxu0 0
      %434 = vmatprep.mubr.bf16.mxu0 0
      %435 = vmatmul.mubr.bf16.gmra.mrb[0].mxu0 %v348
      %v436 = vpop.f32.mrb[0].mxu0
      %v437 = vadd.f32 0.0, %v436
      %v438 = vpop.f32.mrb[0].mxu0
      %v439 = vpop.f32.mrb[0].mxu0
      %v440 = vadd.f32 0.0, %v439
      %v441 = vpop.f32.mrb[0].mxu0
      %442 = vmatprep.mubr.bf16.mxu0 0
      %443 = vmatmul.mubr.bf16.gmra.mrb[0].mxu0 %v351
      %v444 = vpop.f32.mrb[0].mxu0
      %v445 = vadd.f32 0.0, %v444
      %v446 = vpop.f32.mrb[0].mxu0
      %v447 = vpop.f32.mrb[0].mxu0
      %v448 = vadd.f32 0.0, %v447
      %v449 = vpop.f32.mrb[0].mxu0
      %450 = vmatprep.mubr.bf16.mxu0 0
      %451 = vmatmul.mubr.bf16.gmra.mrb[0].mxu0 %v354
      %v452 = vpop.f32.mrb[0].mxu0
      %v453 = vadd.f32 0.0, %v452
      %v454 = vpop.f32.mrb[0].mxu0
      %v455 = vpop.f32.mrb[0].mxu0
      %v456 = vadd.f32 0.0, %v455
      %v457 = vpop.f32.mrb[0].mxu0
      %458 = vmatprep.mubr.bf16.mxu0 0
      %459 = vmatmul.mubr.bf16.gmra.mrb[0].mxu0 %v357
      %v460 = vpop.f32.mrb[0].mxu0
      %v461 = vadd.f32 0.0, %v460
      %v462 = vpop.f32.mrb[0].mxu0
      %v463 = vpop.f32.mrb[0].mxu0
      %v464 = vadd.f32 0.0, %v463
      %v465 = vpop.f32.mrb[0].mxu0
      %466 = vmatprep.mubr.bf16.mxu0 0
      %467 = vmatmul.mubr.bf16.gmra.mrb[0].mxu0 %v360
      %v468 = vpop.f32.mrb[0].mxu0
      %v469 = vadd.f32 0.0, %v468
      %v470 = vpop.f32.mrb[0].mxu0
      %v471 = vpop.f32.mrb[0].mxu0
      %v472 = vadd.f32 0.0, %v471
      %v473 = vpop.f32.mrb[0].mxu0
      %474 = vmatprep.mubr.bf16.mxu0 0
      %475 = vmatmul.mubr.bf16.gmra.mrb[0].mxu0 %v363
      %v476 = vpop.f32.mrb[0].mxu0
      %v477 = vadd.f32 0.0, %v476
      %v478 = vpop.f32.mrb[0].mxu0
      %v479 = vpop.f32.mrb[0].mxu0
      %v480 = vadd.f32 0.0, %v479
      %v481 = vpop.f32.mrb[0].mxu0
      %482 = vmatprep.mubr.bf16.mxu0 0
      %483 = vmatmul.mubr.bf16.gmra.mrb[0].mxu0 %v366
      %v484 = vpop.f32.mrb[0].mxu0
      %v485 = vadd.f32 0.0, %v484
      %v486 = vpop.f32.mrb[0].mxu0
      %v487 = vpop.f32.mrb[0].mxu0
      %v488 = vadd.f32 0.0, %v487
      %v489 = vpop.f32.mrb[0].mxu0
      %490 = vmatprep.mubr.bf16.mxu0 0
      %491 = vmatmul.mubr.bf16.gmra.mrb[0].mxu0 %v369
      %v492 = vpop.f32.mrb[0].mxu0
      %v493 = vadd.f32 0.0, %v492
      %v494 = vpop.f32.mrb[0].mxu0
      %v495 = vpop.f32.mrb[0].mxu0
      %v496 = vadd.f32 0.0, %v495
      %v497 = vpop.f32.mrb[0].mxu0
      %498 = vmatprep.mubr.bf16.mxu0 0
      %499 = vmatmul.mubr.bf16.gmra.mrb[0].mxu0 %v372
      %v500 = vpop.f32.mrb[0].mxu0
      %v501 = vadd.f32 0.0, %v500
      %v502 = vpop.f32.mrb[0].mxu0
      %v503 = vpop.f32.mrb[0].mxu0
      %v504 = vadd.f32 0.0, %v503
      %v505 = vpop.f32.mrb[0].mxu0
      %506 = vmatprep.mubr.bf16.mxu0 0
      %507 = vmatmul.mubr.bf16.gmra.mrb[0].mxu0 %v375
      %v508 = vpop.f32.mrb[0].mxu0
      %v509 = vadd.f32 0.0, %v508
      %v510 = vpop.f32.mrb[0].mxu0
      %v511 = vpop.f32.mrb[0].mxu0
      %v512 = vadd.f32 0.0, %v511
      %v513 = vpop.f32.mrb[0].mxu0
      %514 = vmatprep.mubr.bf16.mxu0 0
      %515 = vmatmul.mubr.bf16.gmra.mrb[0].mxu0 %v378
      %v516 = vpop.f32.mrb[0].mxu0
      %v517 = vadd.f32 0.0, %v516
      %v518 = vpop.f32.mrb[0].mxu0
      %v519 = vpop.f32.mrb[0].mxu0
      %v520 = vadd.f32 0.0, %v519
      %v521 = vpop.f32.mrb[0].mxu0
      %522 = vmatprep.mubr.bf16.mxu0 0
      %523 = vmatmul.mubr.bf16.gmra.mrb[0].mxu0 %v381
      %v524 = vpop.f32.mrb[0].mxu0
      %v525 = vadd.f32 0.0, %v524
      %v526 = vpop.f32.mrb[0].mxu0
      %v527 = vpop.f32.mrb[0].mxu0
      %v528 = vadd.f32 0.0, %v527
      %v529 = vpop.f32.mrb[0].mxu0
      %530 = vmatprep.mubr.bf16.mxu0 0
      %531 = vmatmul.mubr.bf16.gmra.mrb[0].mxu0 %v384
      %v532 = vpop.f32.mrb[0].mxu0
      %v533 = vadd.f32 0.0, %v532
      %v534 = vpop.f32.mrb[0].mxu0
      %v535 = vpop.f32.mrb[0].mxu0
      %v536 = vadd.f32 0.0, %v535
      %v537 = vpop.f32.mrb[0].mxu0
      %538 = vmatprep.mubr.bf16.mxu0 0
      %539 = vmatmul.mubr.bf16.gmra.mrb[0].mxu0 %v387
      %v540 = vpop.f32.mrb[0].mxu0
      %v541 = vadd.f32 0.0, %v540
      %v542 = vpop.f32.mrb[0].mxu0
      %v543 = vpop.f32.mrb[0].mxu0
      %v544 = vadd.f32 0.0, %v543
      %v545 = vpop.f32.mrb[0].mxu0
      %546 = vmatprep.mubr.bf16.mxu0 0
      %547 = vmatmul.mubr.bf16.gmra.mrb[0].mxu0 %v390
      %v548 = vpop.f32.mrb[0].mxu0
      %v549 = vadd.f32 0.0, %v548
      %v550 = vpop.f32.mrb[0].mxu0
      %v551 = vpop.f32.mrb[0].mxu0
      %v552 = vadd.f32 0.0, %v551
      %v553 = vpop.f32.mrb[0].mxu0
      %554 = vmatprep.mubr.bf16.mxu0 0
      %555 = vmatmul.mubr.bf16.gmra.mrb[0].mxu0 %v393
      %v556 = vpop.f32.mrb[0].mxu0
      %v557 = vadd.f32 0.0, %v556
      %v558 = vpop.f32.mrb[0].mxu0
      %v559 = vpop.f32.mrb[0].mxu0
      %v560 = vadd.f32 0.0, %v559
      %v561 = vpop.f32.mrb[0].mxu0
      %562 = vdwg.mxu0
      %v563 = vmax.f32 %v437, 0.0
      %v564 = vmax.f32 %v440, 0.0
      %v565 = vmax.f32 %v445, 0.0
      %v566 = vmax.f32 %v448, 0.0
      %v567 = vmax.f32 %v453, 0.0
      %v568 = vmax.f32 %v456, 0.0
      %v569 = vmax.f32 %v461, 0.0
      %v570 = vmax.f32 %v464, 0.0
      %v571 = vmax.f32 %v469, 0.0
      %v572 = vmax.f32 %v472, 0.0
      %v573 = vmax.f32 %v477, 0.0
      %v574 = vmax.f32 %v480, 0.0
      %v575 = vmax.f32 %v485, 0.0
      %v576 = vmax.f32 %v488, 0.0
      %v577 = vmax.f32 %v493, 0.0
      %v578 = vmax.f32 %v496, 0.0
      %v579 = vmax.f32 %v501, 0.0
      %v580 = vmax.f32 %v504, 0.0
      %v581 = vmax.f32 %v509, 0.0
      %v582 = vmax.f32 %v512, 0.0
      %v583 = vmax.f32 %v517, 0.0
      %v584 = vmax.f32 %v520, 0.0
      %v585 = vmax.f32 %v525, 0.0
      %v586 = vmax.f32 %v528, 0.0
      %v587 = vmax.f32 %v533, 0.0
      %v588 = vmax.f32 %v536, 0.0
      %v589 = vmax.f32 %v541, 0.0
      %v590 = vmax.f32 %v544, 0.0
      %v591 = vmax.f32 %v549, 0.0
      %v592 = vmax.f32 %v552, 0.0
      %v593 = vmax.f32 %v557, 0.0
      %v594 = vmax.f32 %v560, 0.0
      %v595 = vmin.f32 %v563, 1.0
      %v596 = vmin.f32 %v564, 1.0
      %v597 = vmin.f32 %v565, 1.0
      %v598 = vmin.f32 %v566, 1.0
      %v599 = vmin.f32 %v567, 1.0
      %v600 = vmin.f32 %v568, 1.0
      %v601 = vmin.f32 %v569, 1.0
      %v602 = vmin.f32 %v570, 1.0
      %v603 = vmin.f32 %v571, 1.0
      %v604 = vmin.f32 %v572, 1.0
      %v605 = vmin.f32 %v573, 1.0
      %v606 = vmin.f32 %v574, 1.0
      %v607 = vmin.f32 %v575, 1.0
      %v608 = vmin.f32 %v576, 1.0
      %v609 = vmin.f32 %v577, 1.0
      %v610 = vmin.f32 %v578, 1.0
      %v611 = vmin.f32 %v579, 1.0
      %v612 = vmin.f32 %v580, 1.0
      %v613 = vmin.f32 %v581, 1.0
      %v614 = vmin.f32 %v582, 1.0
      %v615 = vmin.f32 %v583, 1.0
      %v616 = vmin.f32 %v584, 1.0
      %v617 = vmin.f32 %v585, 1.0
      %v618 = vmin.f32 %v586, 1.0
      %v619 = vmin.f32 %v587, 1.0
      %v620 = vmin.f32 %v588, 1.0
      %v621 = vmin.f32 %v589, 1.0
      %v622 = vmin.f32 %v590, 1.0
      %v623 = vmin.f32 %v591, 1.0
      %v624 = vmin.f32 %v592, 1.0
      %v625 = vmin.f32 %v593, 1.0
      %v626 = vmin.f32 %v594, 1.0
      %v627 = vadd.f32 %v437, 1e-08
      %v628 = vadd.f32 %v440, 1e-08
      %v629 = vadd.f32 %v445, 1e-08
      %v630 = vadd.f32 %v448, 1e-08
      %v631 = vadd.f32 %v453, 1e-08
      %v632 = vadd.f32 %v456, 1e-08
      %v633 = vadd.f32 %v461, 1e-08
      %v634 = vadd.f32 %v464, 1e-08
      %v635 = vadd.f32 %v469, 1e-08
      %v636 = vadd.f32 %v472, 1e-08
      %v637 = vadd.f32 %v477, 1e-08
      %v638 = vadd.f32 %v480, 1e-08
      %v639 = vadd.f32 %v485, 1e-08
      %v640 = vadd.f32 %v488, 1e-08
      %v641 = vadd.f32 %v493, 1e-08
      %v642 = vadd.f32 %v496, 1e-08
      %v643 = vadd.f32 %v501, 1e-08
      %v644 = vadd.f32 %v504, 1e-08
      %v645 = vadd.f32 %v509, 1e-08
      %v646 = vadd.f32 %v512, 1e-08
      %v647 = vadd.f32 %v517, 1e-08
      %v648 = vadd.f32 %v520, 1e-08
      %v649 = vadd.f32 %v525, 1e-08
      %v650 = vadd.f32 %v528, 1e-08
      %v651 = vadd.f32 %v533, 1e-08
      %v652 = vadd.f32 %v536, 1e-08
      %v653 = vadd.f32 %v541, 1e-08
      %v654 = vadd.f32 %v544, 1e-08
      %v655 = vadd.f32 %v549, 1e-08
      %v656 = vadd.f32 %v552, 1e-08
      %v657 = vadd.f32 %v557, 1e-08
      %v658 = vadd.f32 %v560, 1e-08
      %v659 = vrcp.pop %v627
      %v660 = vrcp.pop %v628
      %v661 = vrcp.pop %v629
      %v662 = vrcp.pop %v630
      %v663 = vrcp.pop %v631
      %v664 = vrcp.pop %v632
      %v665 = vrcp.pop %v633
      %v666 = vrcp.pop %v634
      %v667 = vrcp.pop %v635
      %v668 = vrcp.pop %v636
      %v669 = vrcp.pop %v637
      %v670 = vrcp.pop %v638
      %v671 = vrcp.pop %v639
      %v672 = vrcp.pop %v640
      %v673 = vrcp.pop %v641
      %v674 = vrcp.pop %v642
      %v675 = vrcp.pop %v643
      %v676 = vrcp.pop %v644
      %v677 = vrcp.pop %v645
      %v678 = vrcp.pop %v646
      %v679 = vrcp.pop %v647
      %v680 = vrcp.pop %v648
      %v681 = vrcp.pop %v649
      %v682 = vrcp.pop %v650
      %v683 = vrcp.pop %v651
      %v684 = vrcp.pop %v652
      %v685 = vrcp.pop %v653
      %v686 = vrcp.pop %v654
      %v687 = vrcp.pop %v655
      %v688 = vrcp.pop %v656
      %v689 = vrcp.pop %v657
      %v690 = vrcp.pop %v658
      %v691 = vmul.f32 %v659, 9.0
      %v692 = vmul.f32 %v660, 9.0
      %v693 = vmul.f32 %v661, 9.0
      %v694 = vmul.f32 %v662, 9.0
      %v695 = vmul.f32 %v663, 9.0
      %v696 = vmul.f32 %v664, 9.0
      %v697 = vmul.f32 %v665, 9.0
      %v698 = vmul.f32 %v666, 9.0
      %v699 = vmul.f32 %v667, 9.0
      %v700 = vmul.f32 %v668, 9.0
      %v701 = vmul.f32 %v669, 9.0
      %v702 = vmul.f32 %v670, 9.0
      %v703 = vmul.f32 %v671, 9.0
      %v704 = vmul.f32 %v672, 9.0
      %v705 = vmul.f32 %v673, 9.0
      %v706 = vmul.f32 %v674, 9.0
      %v707 = vmul.f32 %v675, 9.0
      %v708 = vmul.f32 %v676, 9.0
      %v709 = vmul.f32 %v677, 9.0
      %v710 = vmul.f32 %v678, 9.0
      %v711 = vmul.f32 %v679, 9.0
      %v712 = vmul.f32 %v680, 9.0
      %v713 = vmul.f32 %v681, 9.0
      %v714 = vmul.f32 %v682, 9.0
      %v715 = vmul.f32 %v683, 9.0
      %v716 = vmul.f32 %v684, 9.0
      %v717 = vmul.f32 %v685, 9.0
      %v718 = vmul.f32 %v686, 9.0
      %v719 = vmul.f32 %v687, 9.0
      %v720 = vmul.f32 %v688, 9.0
      %v721 = vmul.f32 %v689, 9.0
      %v722 = vmul.f32 %v690, 9.0
      %v723 = vmul.f32 %v691, %v595
      %v724 = vmul.f32 %v692, %v596
      %v725 = vmul.f32 %v693, %v597
      %v726 = vmul.f32 %v694, %v598
      %v727 = vmul.f32 %v695, %v599
      %v728 = vmul.f32 %v696, %v600
      %v729 = vmul.f32 %v697, %v601
      %v730 = vmul.f32 %v698, %v602
      %v731 = vmul.f32 %v699, %v603
      %v732 = vmul.f32 %v700, %v604
      %v733 = vmul.f32 %v701, %v605
      %v734 = vmul.f32 %v702, %v606
      %v735 = vmul.f32 %v703, %v607
      %v736 = vmul.f32 %v704, %v608
      %v737 = vmul.f32 %v705, %v609
      %v738 = vmul.f32 %v706, %v610
      %v739 = vmul.f32 %v707, %v611
      %v740 = vmul.f32 %v708, %v612
      %v741 = vmul.f32 %v709, %v613
      %v742 = vmul.f32 %v710, %v614
      %v743 = vmul.f32 %v711, %v615
      %v744 = vmul.f32 %v712, %v616
      %v745 = vmul.f32 %v713, %v617
      %v746 = vmul.f32 %v714, %v618
      %v747 = vmul.f32 %v715, %v619
      %v748 = vmul.f32 %v716, %v620
      %v749 = vmul.f32 %v717, %v621
      %v750 = vmul.f32 %v718, %v622
      %v751 = vmul.f32 %v719, %v623
      %v752 = vmul.f32 %v720, %v624
      %v753 = vmul.f32 %v721, %v625
      %v754 = vmul.f32 %v722, %v626
      %v755 = vld [vmem:[%s2] sm:$0x1]
      %v757 = vlaneseq
      %v758 = vshrl.u32 %v757, 7
      %v759 = vsub.s32 0, %v758
      %v760 = vrot.slane %v755, %v759
      %v762 = vadd.f32 %v437, %v760
      %v763 = vadd.f32 %v440, %v760
      %v764 = vadd.f32 %v445, %v760
      %v765 = vadd.f32 %v448, %v760
      %v766 = vadd.f32 %v453, %v760
      %v767 = vadd.f32 %v456, %v760
      %v768 = vadd.f32 %v461, %v760
      %v769 = vadd.f32 %v464, %v760
      %v770 = vadd.f32 %v469, %v760
      %v771 = vadd.f32 %v472, %v760
      %v772 = vadd.f32 %v477, %v760
      %v773 = vadd.f32 %v480, %v760
      %v774 = vadd.f32 %v485, %v760
      %v775 = vadd.f32 %v488, %v760
      %v776 = vadd.f32 %v493, %v760
      %v777 = vadd.f32 %v496, %v760
      %v778 = vadd.f32 %v501, %v760
      %v779 = vadd.f32 %v504, %v760
      %v780 = vadd.f32 %v509, %v760
      %v781 = vadd.f32 %v512, %v760
      %v782 = vadd.f32 %v517, %v760
      %v783 = vadd.f32 %v520, %v760
      %v784 = vadd.f32 %v525, %v760
      %v785 = vadd.f32 %v528, %v760
      %v786 = vadd.f32 %v533, %v760
      %v787 = vadd.f32 %v536, %v760
      %v788 = vadd.f32 %v541, %v760
      %v789 = vadd.f32 %v544, %v760
      %v790 = vadd.f32 %v549, %v760
      %v791 = vadd.f32 %v552, %v760
      %v792 = vadd.f32 %v557, %v760
      %v793 = vadd.f32 %v560, %v760
      %vm794 = vcmp.ge.f32.partialorder %v762, 0.0
      %vm795 = vcmp.ge.f32.partialorder %v763, 0.0
      %vm796 = vcmp.ge.f32.partialorder %v764, 0.0
      %vm797 = vcmp.ge.f32.partialorder %v765, 0.0
      %vm798 = vcmp.ge.f32.partialorder %v766, 0.0
      %vm799 = vcmp.ge.f32.partialorder %v767, 0.0
      %vm800 = vcmp.ge.f32.partialorder %v768, 0.0
      %vm801 = vcmp.ge.f32.partialorder %v769, 0.0
      %vm802 = vcmp.ge.f32.partialorder %v770, 0.0
      %vm803 = vcmp.ge.f32.partialorder %v771, 0.0
      %vm804 = vcmp.ge.f32.partialorder %v772, 0.0
      %vm805 = vcmp.ge.f32.partialorder %v773, 0.0
      %vm806 = vcmp.ge.f32.partialorder %v774, 0.0
      %vm807 = vcmp.ge.f32.partialorder %v775, 0.0
      %vm808 = vcmp.ge.f32.partialorder %v776, 0.0
      %vm809 = vcmp.ge.f32.partialorder %v777, 0.0
      %vm810 = vcmp.ge.f32.partialorder %v778, 0.0
      %vm811 = vcmp.ge.f32.partialorder %v779, 0.0
      %vm812 = vcmp.ge.f32.partialorder %v780, 0.0
      %vm813 = vcmp.ge.f32.partialorder %v781, 0.0
      %vm814 = vcmp.ge.f32.partialorder %v782, 0.0
      %vm815 = vcmp.ge.f32.partialorder %v783, 0.0
      %vm816 = vcmp.ge.f32.partialorder %v784, 0.0
      %vm817 = vcmp.ge.f32.partialorder %v785, 0.0
      %vm818 = vcmp.ge.f32.partialorder %v786, 0.0
      %vm819 = vcmp.ge.f32.partialorder %v787, 0.0
      %vm820 = vcmp.ge.f32.partialorder %v788, 0.0
      %vm821 = vcmp.ge.f32.partialorder %v789, 0.0
      %vm822 = vcmp.ge.f32.partialorder %v790, 0.0
      %vm823 = vcmp.ge.f32.partialorder %v791, 0.0
      %vm824 = vcmp.ge.f32.partialorder %v792, 0.0
      %vm825 = vcmp.ge.f32.partialorder %v793, 0.0
      %v826 = vmul.f32 %v762, 0.2
      %v827 = vmul.f32 %v763, 0.2
      %v828 = vmul.f32 %v764, 0.2
      %v829 = vmul.f32 %v765, 0.2
      %v830 = vmul.f32 %v766, 0.2
      %v831 = vmul.f32 %v767, 0.2
      %v832 = vmul.f32 %v768, 0.2
      %v833 = vmul.f32 %v769, 0.2
      %v834 = vmul.f32 %v770, 0.2
      %v835 = vmul.f32 %v771, 0.2
      %v836 = vmul.f32 %v772, 0.2
      %v837 = vmul.f32 %v773, 0.2
      %v838 = vmul.f32 %v774, 0.2
      %v839 = vmul.f32 %v775, 0.2
      %v840 = vmul.f32 %v776, 0.2
      %v841 = vmul.f32 %v777, 0.2
      %v842 = vmul.f32 %v778, 0.2
      %v843 = vmul.f32 %v779, 0.2
      %v844 = vmul.f32 %v780, 0.2
      %v845 = vmul.f32 %v781, 0.2
      %v846 = vmul.f32 %v782, 0.2
      %v847 = vmul.f32 %v783, 0.2
      %v848 = vmul.f32 %v784, 0.2
      %v849 = vmul.f32 %v785, 0.2
      %v850 = vmul.f32 %v786, 0.2
      %v851 = vmul.f32 %v787, 0.2
      %v852 = vmul.f32 %v788, 0.2
      %v853 = vmul.f32 %v789, 0.2
      %v854 = vmul.f32 %v790, 0.2
      %v855 = vmul.f32 %v791, 0.2
      %v856 = vmul.f32 %v792, 0.2
      %v857 = vmul.f32 %v793, 0.2
      %v858 = vsel %vm794, %v762, %v826
      %v859 = vsel %vm795, %v763, %v827
      %v860 = vsel %vm796, %v764, %v828
      %v861 = vsel %vm797, %v765, %v829
      %v862 = vsel %vm798, %v766, %v830
      %v863 = vsel %vm799, %v767, %v831
      %v864 = vsel %vm800, %v768, %v832
      %v865 = vsel %vm801, %v769, %v833
      %v866 = vsel %vm802, %v770, %v834
      %v867 = vsel %vm803, %v771, %v835
      %v868 = vsel %vm804, %v772, %v836
      %v869 = vsel %vm805, %v773, %v837
      %v870 = vsel %vm806, %v774, %v838
      %v871 = vsel %vm807, %v775, %v839
      %v872 = vsel %vm808, %v776, %v840
      %v873 = vsel %vm809, %v777, %v841
      %v874 = vsel %vm810, %v778, %v842
      %v875 = vsel %vm811, %v779, %v843
      %v876 = vsel %vm812, %v780, %v844
      %v877 = vsel %vm813, %v781, %v845
      %v878 = vsel %vm814, %v782, %v846
      %v879 = vsel %vm815, %v783, %v847
      %v880 = vsel %vm816, %v784, %v848
      %v881 = vsel %vm817, %v785, %v849
      %v882 = vsel %vm818, %v786, %v850
      %v883 = vsel %vm819, %v787, %v851
      %v884 = vsel %vm820, %v788, %v852
      %v885 = vsel %vm821, %v789, %v853
      %v886 = vsel %vm822, %v790, %v854
      %v887 = vsel %vm823, %v791, %v855
      %v888 = vsel %vm824, %v792, %v856
      %v889 = vsel %vm825, %v793, %v857
      %v890 = vmul.f32 %v858, 1.4142135
      %v891 = vmul.f32 %v859, 1.4142135
      %v892 = vmul.f32 %v860, 1.4142135
      %v893 = vmul.f32 %v861, 1.4142135
      %v894 = vmul.f32 %v862, 1.4142135
      %v895 = vmul.f32 %v863, 1.4142135
      %v896 = vmul.f32 %v864, 1.4142135
      %v897 = vmul.f32 %v865, 1.4142135
      %v898 = vmul.f32 %v866, 1.4142135
      %v899 = vmul.f32 %v867, 1.4142135
      %v900 = vmul.f32 %v868, 1.4142135
      %v901 = vmul.f32 %v869, 1.4142135
      %v902 = vmul.f32 %v870, 1.4142135
      %v903 = vmul.f32 %v871, 1.4142135
      %v904 = vmul.f32 %v872, 1.4142135
      %v905 = vmul.f32 %v873, 1.4142135
      %v906 = vmul.f32 %v874, 1.4142135
      %v907 = vmul.f32 %v875, 1.4142135
      %v908 = vmul.f32 %v876, 1.4142135
      %v909 = vmul.f32 %v877, 1.4142135
      %v910 = vmul.f32 %v878, 1.4142135
      %v911 = vmul.f32 %v879, 1.4142135
      %v912 = vmul.f32 %v880, 1.4142135
      %v913 = vmul.f32 %v881, 1.4142135
      %v914 = vmul.f32 %v882, 1.4142135
      %v915 = vmul.f32 %v883, 1.4142135
      %v916 = vmul.f32 %v884, 1.4142135
      %v917 = vmul.f32 %v885, 1.4142135
      %v918 = vmul.f32 %v886, 1.4142135
      %v919 = vmul.f32 %v887, 1.4142135
      %v920 = vmul.f32 %v888, 1.4142135
      %v921 = vmul.f32 %v889, 1.4142135
      %923 = vset.pattern.permute.xlu0 8
      %924 = vperm.xlu0 %923, %v723
      %v925 = vpop.permute.xlu0 %924
      %928 = vset.pattern.permute.xlu0 8
      %929 = vperm.xlu0 %928, %v724
      %v930 = vpop.permute.xlu0 %929
      %933 = vset.pattern.permute.xlu0 8
      %934 = vperm.xlu0 %933, %v725
      %v935 = vpop.permute.xlu0 %934
      %938 = vset.pattern.permute.xlu0 8
      %939 = vperm.xlu0 %938, %v726
      %v940 = vpop.permute.xlu0 %939
      %943 = vset.pattern.permute.xlu0 8
      %944 = vperm.xlu0 %943, %v727
      %v945 = vpop.permute.xlu0 %944
      %948 = vset.pattern.permute.xlu0 8
      %949 = vperm.xlu0 %948, %v728
      %v950 = vpop.permute.xlu0 %949
      %953 = vset.pattern.permute.xlu0 8
      %954 = vperm.xlu0 %953, %v729
      %v955 = vpop.permute.xlu0 %954
      %958 = vset.pattern.permute.xlu0 8
      %959 = vperm.xlu0 %958, %v730
      %v960 = vpop.permute.xlu0 %959
      %963 = vset.pattern.permute.xlu0 8
      %964 = vperm.xlu0 %963, %v731
      %v965 = vpop.permute.xlu0 %964
      %968 = vset.pattern.permute.xlu0 8
      %969 = vperm.xlu0 %968, %v732
      %v970 = vpop.permute.xlu0 %969
      %973 = vset.pattern.permute.xlu0 8
      %974 = vperm.xlu0 %973, %v733
      %v975 = vpop.permute.xlu0 %974
      %978 = vset.pattern.permute.xlu0 8
      %979 = vperm.xlu0 %978, %v734
      %v980 = vpop.permute.xlu0 %979
      %983 = vset.pattern.permute.xlu0 8
      %984 = vperm.xlu0 %983, %v735
      %v985 = vpop.permute.xlu0 %984
      %988 = vset.pattern.permute.xlu0 8
      %989 = vperm.xlu0 %988, %v736
      %v990 = vpop.permute.xlu0 %989
      %993 = vset.pattern.permute.xlu0 8
      %994 = vperm.xlu0 %993, %v737
      %v995 = vpop.permute.xlu0 %994
      %998 = vset.pattern.permute.xlu0 8
      %999 = vperm.xlu0 %998, %v738
      %v1000 = vpop.permute.xlu0 %999
      %1003 = vset.pattern.permute.xlu0 8
      %1004 = vperm.xlu0 %1003, %v739
      %v1005 = vpop.permute.xlu0 %1004
      %1008 = vset.pattern.permute.xlu0 8
      %1009 = vperm.xlu0 %1008, %v740
      %v1010 = vpop.permute.xlu0 %1009
      %1013 = vset.pattern.permute.xlu0 8
      %1014 = vperm.xlu0 %1013, %v741
      %v1015 = vpop.permute.xlu0 %1014
      %1018 = vset.pattern.permute.xlu0 8
      %1019 = vperm.xlu0 %1018, %v742
      %v1020 = vpop.permute.xlu0 %1019
      %1023 = vset.pattern.permute.xlu0 8
      %1024 = vperm.xlu0 %1023, %v743
      %v1025 = vpop.permute.xlu0 %1024
      %1028 = vset.pattern.permute.xlu0 8
      %1029 = vperm.xlu0 %1028, %v744
      %v1030 = vpop.permute.xlu0 %1029
      %1033 = vset.pattern.permute.xlu0 8
      %1034 = vperm.xlu0 %1033, %v745
      %v1035 = vpop.permute.xlu0 %1034
      %1038 = vset.pattern.permute.xlu0 8
      %1039 = vperm.xlu0 %1038, %v746
      %v1040 = vpop.permute.xlu0 %1039
      %1043 = vset.pattern.permute.xlu0 8
      %1044 = vperm.xlu0 %1043, %v747
      %v1045 = vpop.permute.xlu0 %1044
      %1048 = vset.pattern.permute.xlu0 8
      %1049 = vperm.xlu0 %1048, %v748
      %v1050 = vpop.permute.xlu0 %1049
      %1053 = vset.pattern.permute.xlu0 8
      %1054 = vperm.xlu0 %1053, %v749
      %v1055 = vpop.permute.xlu0 %1054
      %1058 = vset.pattern.permute.xlu0 8
      %1059 = vperm.xlu0 %1058, %v750
      %v1060 = vpop.permute.xlu0 %1059
      %1063 = vset.pattern.permute.xlu0 8
      %1064 = vperm.xlu0 %1063, %v751
      %v1065 = vpop.permute.xlu0 %1064
      %1068 = vset.pattern.permute.xlu0 8
      %1069 = vperm.xlu0 %1068, %v752
      %v1070 = vpop.permute.xlu0 %1069
      %1073 = vset.pattern.permute.xlu0 8
      %1074 = vperm.xlu0 %1073, %v753
      %v1075 = vpop.permute.xlu0 %1074
      %1078 = vset.pattern.permute.xlu0 8
      %1079 = vperm.xlu0 %1078, %v754
      %v1080 = vpop.permute.xlu0 %1079
      %v1082 = vmul.f32 %v890, %v925
      %v1083 = vmul.f32 %v891, %v930
      %v1084 = vmul.f32 %v892, %v935
      %v1085 = vmul.f32 %v893, %v940
      %v1086 = vmul.f32 %v894, %v945
      %v1087 = vmul.f32 %v895, %v950
      %v1088 = vmul.f32 %v896, %v955
      %v1089 = vmul.f32 %v897, %v960
      %v1090 = vmul.f32 %v898, %v965
      %v1091 = vmul.f32 %v899, %v970
      %v1092 = vmul.f32 %v900, %v975
      %v1093 = vmul.f32 %v901, %v980
      %v1094 = vmul.f32 %v902, %v985
      %v1095 = vmul.f32 %v903, %v990
      %v1096 = vmul.f32 %v904, %v995
      %v1097 = vmul.f32 %v905, %v1000
      %v1098 = vmul.f32 %v906, %v1005
      %v1099 = vmul.f32 %v907, %v1010
      %v1100 = vmul.f32 %v908, %v1015
      %v1101 = vmul.f32 %v909, %v1020
      %v1102 = vmul.f32 %v910, %v1025
      %v1103 = vmul.f32 %v911, %v1030
      %v1104 = vmul.f32 %v912, %v1035
      %v1105 = vmul.f32 %v913, %v1040
      %v1106 = vmul.f32 %v914, %v1045
      %v1107 = vmul.f32 %v915, %v1050
      %v1108 = vmul.f32 %v916, %v1055
      %v1109 = vmul.f32 %v917, %v1060
      %v1110 = vmul.f32 %v918, %v1065
      %v1111 = vmul.f32 %v919, %v1070
      %v1112 = vmul.f32 %v920, %v1075
      %v1113 = vmul.f32 %v921, %v1080
      %v1114 = vlaneseq
      %v1115 = vand.u32 %v1114, 127
      %vm1116 = vcmp.eq.s32.totalorder %v1115, 8
      %1118 = vset.pattern.permute.xlu0 8
      %1119 = vperm.xlu0 %1118, %v595
      %v1120 = vpop.permute.xlu0 %1119
      %1123 = vset.pattern.permute.xlu0 8
      %1124 = vperm.xlu0 %1123, %v596
      %v1125 = vpop.permute.xlu0 %1124
      %1128 = vset.pattern.permute.xlu0 8
      %1129 = vperm.xlu0 %1128, %v597
      %v1130 = vpop.permute.xlu0 %1129
      %1133 = vset.pattern.permute.xlu0 8
      %1134 = vperm.xlu0 %1133, %v598
      %v1135 = vpop.permute.xlu0 %1134
      %1138 = vset.pattern.permute.xlu0 8
      %1139 = vperm.xlu0 %1138, %v599
      %v1140 = vpop.permute.xlu0 %1139
      %1143 = vset.pattern.permute.xlu0 8
      %1144 = vperm.xlu0 %1143, %v600
      %v1145 = vpop.permute.xlu0 %1144
      %1148 = vset.pattern.permute.xlu0 8
      %1149 = vperm.xlu0 %1148, %v601
      %v1150 = vpop.permute.xlu0 %1149
      %1153 = vset.pattern.permute.xlu0 8
      %1154 = vperm.xlu0 %1153, %v602
      %v1155 = vpop.permute.xlu0 %1154
      %1158 = vset.pattern.permute.xlu0 8
      %1159 = vperm.xlu0 %1158, %v603
      %v1160 = vpop.permute.xlu0 %1159
      %1163 = vset.pattern.permute.xlu0 8
      %1164 = vperm.xlu0 %1163, %v604
      %v1165 = vpop.permute.xlu0 %1164
      %1168 = vset.pattern.permute.xlu0 8
      %1169 = vperm.xlu0 %1168, %v605
      %v1170 = vpop.permute.xlu0 %1169
      %1173 = vset.pattern.permute.xlu0 8
      %1174 = vperm.xlu0 %1173, %v606
      %v1175 = vpop.permute.xlu0 %1174
      %1178 = vset.pattern.permute.xlu0 8
      %1179 = vperm.xlu0 %1178, %v607
      %v1180 = vpop.permute.xlu0 %1179
      %1183 = vset.pattern.permute.xlu0 8
      %1184 = vperm.xlu0 %1183, %v608
      %v1185 = vpop.permute.xlu0 %1184
      %1188 = vset.pattern.permute.xlu0 8
      %1189 = vperm.xlu0 %1188, %v609
      %v1190 = vpop.permute.xlu0 %1189
      %1193 = vset.pattern.permute.xlu0 8
      %1194 = vperm.xlu0 %1193, %v610
      %v1195 = vpop.permute.xlu0 %1194
      %1198 = vset.pattern.permute.xlu0 8
      %1199 = vperm.xlu0 %1198, %v611
      %v1200 = vpop.permute.xlu0 %1199
      %1203 = vset.pattern.permute.xlu0 8
      %1204 = vperm.xlu0 %1203, %v612
      %v1205 = vpop.permute.xlu0 %1204
      %1208 = vset.pattern.permute.xlu0 8
      %1209 = vperm.xlu0 %1208, %v613
      %v1210 = vpop.permute.xlu0 %1209
      %1213 = vset.pattern.permute.xlu0 8
      %1214 = vperm.xlu0 %1213, %v614
      %v1215 = vpop.permute.xlu0 %1214
      %1218 = vset.pattern.permute.xlu0 8
      %1219 = vperm.xlu0 %1218, %v615
      %v1220 = vpop.permute.xlu0 %1219
      %1223 = vset.pattern.permute.xlu0 8
      %1224 = vperm.xlu0 %1223, %v616
      %v1225 = vpop.permute.xlu0 %1224
      %1228 = vset.pattern.permute.xlu0 8
      %1229 = vperm.xlu0 %1228, %v617
      %v1230 = vpop.permute.xlu0 %1229
      %1233 = vset.pattern.permute.xlu0 8
      %1234 = vperm.xlu0 %1233, %v618
      %v1235 = vpop.permute.xlu0 %1234
      %1238 = vset.pattern.permute.xlu0 8
      %1239 = vperm.xlu0 %1238, %v619
      %v1240 = vpop.permute.xlu0 %1239
      %1243 = vset.pattern.permute.xlu0 8
      %1244 = vperm.xlu0 %1243, %v620
      %v1245 = vpop.permute.xlu0 %1244
      %1248 = vset.pattern.permute.xlu0 8
      %1249 = vperm.xlu0 %1248, %v621
      %v1250 = vpop.permute.xlu0 %1249
      %1253 = vset.pattern.permute.xlu0 8
      %1254 = vperm.xlu0 %1253, %v622
      %v1255 = vpop.permute.xlu0 %1254
      %1258 = vset.pattern.permute.xlu0 8
      %1259 = vperm.xlu0 %1258, %v623
      %v1260 = vpop.permute.xlu0 %1259
      %1263 = vset.pattern.permute.xlu0 8
      %1264 = vperm.xlu0 %1263, %v624
      %v1265 = vpop.permute.xlu0 %1264
      %1268 = vset.pattern.permute.xlu0 8
      %1269 = vperm.xlu0 %1268, %v625
      %v1270 = vpop.permute.xlu0 %1269
      %1273 = vset.pattern.permute.xlu0 8
      %1274 = vperm.xlu0 %1273, %v626
      %v1275 = vpop.permute.xlu0 %1274
      %v1277 = vsel %vm1116, %v1120, %v1082
      %v1278 = vsel %vm1116, %v1125, %v1083
      %v1279 = vsel %vm1116, %v1130, %v1084
      %v1280 = vsel %vm1116, %v1135, %v1085
      %v1281 = vsel %vm1116, %v1140, %v1086
      %v1282 = vsel %vm1116, %v1145, %v1087
      %v1283 = vsel %vm1116, %v1150, %v1088
      %v1284 = vsel %vm1116, %v1155, %v1089
      %v1285 = vsel %vm1116, %v1160, %v1090
      %v1286 = vsel %vm1116, %v1165, %v1091
      %v1287 = vsel %vm1116, %v1170, %v1092
      %v1288 = vsel %vm1116, %v1175, %v1093
      %v1289 = vsel %vm1116, %v1180, %v1094
      %v1290 = vsel %vm1116, %v1185, %v1095
      %v1291 = vsel %vm1116, %v1190, %v1096
      %v1292 = vsel %vm1116, %v1195, %v1097
      %v1293 = vsel %vm1116, %v1200, %v1098
      %v1294 = vsel %vm1116, %v1205, %v1099
      %v1295 = vsel %vm1116, %v1210, %v1100
      %v1296 = vsel %vm1116, %v1215, %v1101
      %v1297 = vsel %vm1116, %v1220, %v1102
      %v1298 = vsel %vm1116, %v1225, %v1103
      %v1299 = vsel %vm1116, %v1230, %v1104
      %v1300 = vsel %vm1116, %v1235, %v1105
      %v1301 = vsel %vm1116, %v1240, %v1106
      %v1302 = vsel %vm1116, %v1245, %v1107
      %v1303 = vsel %vm1116, %v1250, %v1108
      %v1304 = vsel %vm1116, %v1255, %v1109
      %v1305 = vsel %vm1116, %v1260, %v1110
      %v1306 = vsel %vm1116, %v1265, %v1111
      %v1307 = vsel %vm1116, %v1270, %v1112
      %v1308 = vsel %vm1116, %v1275, %v1113
      %v1309 = vpack.c.bf16 %v1278, %v1277
      %v1310 = vpack.c.bf16 %v1280, %v1279
      %v1311 = vpack.c.bf16 %v1282, %v1281
      %v1312 = vpack.c.bf16 %v1284, %v1283
      %v1313 = vpack.c.bf16 %v1286, %v1285
      %v1314 = vpack.c.bf16 %v1288, %v1287
      %v1315 = vpack.c.bf16 %v1290, %v1289
      %v1316 = vpack.c.bf16 %v1292, %v1291
      %v1317 = vpack.c.bf16 %v1294, %v1293
      %v1318 = vpack.c.bf16 %v1296, %v1295
      %v1319 = vpack.c.bf16 %v1298, %v1297
      %v1320 = vpack.c.bf16 %v1300, %v1299
      %v1321 = vpack.c.bf16 %v1302, %v1301
      %v1322 = vpack.c.bf16 %v1304, %v1303
      %v1323 = vpack.c.bf16 %v1306, %v1305
      %v1324 = vpack.c.bf16 %v1308, %v1307
      %v1341 = vunpack.c.l.b16 %v1309
      %v1342 = vunpack.c.h.b16 %v1309
      %v1343 = vunpack.c.l.b16 %v1310
      %v1344 = vunpack.c.h.b16 %v1310
      %v1345 = vunpack.c.l.b16 %v1311
      %v1346 = vunpack.c.h.b16 %v1311
      %v1347 = vunpack.c.l.b16 %v1312
      %v1348 = vunpack.c.h.b16 %v1312
      %v1349 = vunpack.c.l.b16 %v1313
      %v1350 = vunpack.c.h.b16 %v1313
      %v1351 = vunpack.c.l.b16 %v1314
      %v1352 = vunpack.c.h.b16 %v1314
      %v1353 = vunpack.c.l.b16 %v1315
      %v1354 = vunpack.c.h.b16 %v1315
      %v1355 = vunpack.c.l.b16 %v1316
      %v1356 = vunpack.c.h.b16 %v1316
      %v1357 = vunpack.c.l.b16 %v1317
      %v1358 = vunpack.c.h.b16 %v1317
      %v1359 = vunpack.c.l.b16 %v1318
      %v1360 = vunpack.c.h.b16 %v1318
      %v1361 = vunpack.c.l.b16 %v1319
      %v1362 = vunpack.c.h.b16 %v1319
      %v1363 = vunpack.c.l.b16 %v1320
      %v1364 = vunpack.c.h.b16 %v1320
      %v1365 = vunpack.c.l.b16 %v1321
      %v1366 = vunpack.c.h.b16 %v1321
      %v1367 = vunpack.c.l.b16 %v1322
      %v1368 = vunpack.c.h.b16 %v1322
      %v1369 = vunpack.c.l.b16 %v1323
      %v1370 = vunpack.c.h.b16 %v1323
      %v1371 = vunpack.c.l.b16 %v1324
      %v1372 = vunpack.c.h.b16 %v1324
      %v1373 = vpack.c.b16 %v1341, %v1341
      %v1374 = vpack.c.b16 %v1342, %v1342
      %v1375 = vpack.c.b16 %v1343, %v1343
      %v1376 = vpack.c.b16 %v1344, %v1344
      %v1377 = vpack.c.b16 %v1345, %v1345
      %v1378 = vpack.c.b16 %v1346, %v1346
      %v1379 = vpack.c.b16 %v1347, %v1347
      %v1380 = vpack.c.b16 %v1348, %v1348
      %v1381 = vpack.c.b16 %v1349, %v1349
      %v1382 = vpack.c.b16 %v1350, %v1350
      %v1383 = vpack.c.b16 %v1351, %v1351
      %v1384 = vpack.c.b16 %v1352, %v1352
      %v1385 = vpack.c.b16 %v1353, %v1353
      %v1386 = vpack.c.b16 %v1354, %v1354
      %v1387 = vpack.c.b16 %v1355, %v1355
      %v1388 = vpack.c.b16 %v1356, %v1356
      %v1389 = vpack.c.b16 %v1357, %v1357
      %v1390 = vpack.c.b16 %v1358, %v1358
      %v1391 = vpack.c.b16 %v1359, %v1359
      %v1392 = vpack.c.b16 %v1360, %v1360
      %v1393 = vpack.c.b16 %v1361, %v1361
      %v1394 = vpack.c.b16 %v1362, %v1362
      %v1395 = vpack.c.b16 %v1363, %v1363
      %v1396 = vpack.c.b16 %v1364, %v1364
      %v1397 = vpack.c.b16 %v1365, %v1365
      %v1398 = vpack.c.b16 %v1366, %v1366
      %v1399 = vpack.c.b16 %v1367, %v1367
      %v1400 = vpack.c.b16 %v1368, %v1368
      %v1401 = vpack.c.b16 %v1369, %v1369
      %v1402 = vpack.c.b16 %v1370, %v1370
      %v1403 = vpack.c.b16 %v1371, %v1371
      %v1404 = vpack.c.b16 %v1372, %v1372
      %vm1437 = vcmask 125952
      %1438 = vst.msk [vmem:[%s208] sm:$0xf] %vm1437, %v1373
      %1439 = vst.msk [vmem:[%s208 + $0x4] sm:$0xf] %vm1437, %v1374
      %1440 = vst.msk [vmem:[%s208 + $0x8] sm:$0xf] %vm1437, %v1375
      %1441 = vst.msk [vmem:[%s208 + $0xc] sm:$0xf] %vm1437, %v1376
      %1442 = vst.msk [vmem:[%s208 + $0x10] sm:$0xf] %vm1437, %v1377
      %1443 = vst.msk [vmem:[%s208 + $0x14] sm:$0xf] %vm1437, %v1378
      %1444 = vst.msk [vmem:[%s208 + $0x18] sm:$0xf] %vm1437, %v1379
      %1445 = vst.msk [vmem:[%s208 + $0x1c] sm:$0xf] %vm1437, %v1380
      %1446 = vst.msk [vmem:[%s208 + $0x20] sm:$0xf] %vm1437, %v1381
      %1447 = vst.msk [vmem:[%s208 + $0x24] sm:$0xf] %vm1437, %v1382
      %1448 = vst.msk [vmem:[%s208 + $0x28] sm:$0xf] %vm1437, %v1383
      %1449 = vst.msk [vmem:[%s208 + $0x2c] sm:$0xf] %vm1437, %v1384
      %1450 = vst.msk [vmem:[%s208 + $0x30] sm:$0xf] %vm1437, %v1385
      %1451 = vst.msk [vmem:[%s208 + $0x34] sm:$0xf] %vm1437, %v1386
      %1452 = vst.msk [vmem:[%s208 + $0x38] sm:$0xf] %vm1437, %v1387
      %1453 = vst.msk [vmem:[%s208 + $0x3c] sm:$0xf] %vm1437, %v1388
      %1454 = vst.msk [vmem:[%s208 + $0x40] sm:$0xf] %vm1437, %v1389
      %1455 = vst.msk [vmem:[%s208 + $0x44] sm:$0xf] %vm1437, %v1390
      %1456 = vst.msk [vmem:[%s208 + $0x48] sm:$0xf] %vm1437, %v1391
      %1457 = vst.msk [vmem:[%s208 + $0x4c] sm:$0xf] %vm1437, %v1392
      %1458 = vst.msk [vmem:[%s208 + $0x50] sm:$0xf] %vm1437, %v1393
      %1459 = vst.msk [vmem:[%s208 + $0x54] sm:$0xf] %vm1437, %v1394
      %1460 = vst.msk [vmem:[%s208 + $0x58] sm:$0xf] %vm1437, %v1395
      %1461 = vst.msk [vmem:[%s208 + $0x5c] sm:$0xf] %vm1437, %v1396
      %1462 = vst.msk [vmem:[%s208 + $0x60] sm:$0xf] %vm1437, %v1397
      %1463 = vst.msk [vmem:[%s208 + $0x64] sm:$0xf] %vm1437, %v1398
      %1464 = vst.msk [vmem:[%s208 + $0x68] sm:$0xf] %vm1437, %v1399
      %1465 = vst.msk [vmem:[%s208 + $0x6c] sm:$0xf] %vm1437, %v1400
      %1466 = vst.msk [vmem:[%s208 + $0x70] sm:$0xf] %vm1437, %v1401
      %1467 = vst.msk [vmem:[%s208 + $0x74] sm:$0xf] %vm1437, %v1402
      %1468 = vst.msk [vmem:[%s208 + $0x78] sm:$0xf] %vm1437, %v1403
      %1469 = vst.msk [vmem:[%s208 + $0x7c] sm:$0xf] %vm1437, %v1404
      %s1470 = smul.u32 32, %s19
      %p1471 = scmp.lt.s32.totalorder %s18, 1
      %s1472 = scalar_select %p1471, %s18, 1
      %p1473 = scmp.lt.s32.totalorder %s1470, 31
      %s1474 = scalar_select %p1473, %s1470, 31
      %s1475 = smul.addr %s1472, 32
      %s1476 = sadd.s32 %s1474, %s1475
      %s1477 = smul.addr %s1476, 4
      %s1478 = scalar_lea.vmem %s3, %s1477
      // Predicated region
      $region33: #{tpu_custom_call.1} parent=31 // pred_check
        %p1479 = pneg %p116
      $region34: #{tpu_custom_call.1} parent=31 // pred_check_branch
        %1481 = sbr.rel (%p1479) target = $region36
      $region35: #{tpu_custom_call.1} parent=31 // pred_region
        %s1482 = smul.u32 32, %s19
      $region36: #{tpu_custom_call.1} parent=31 // pred_fallthru
        _
    $region32: #{tpu_custom_call.1} parent=5 // pred_fallthru
      _
    %p1483 = scmp.le.s32.totalorder 2, %s9
    // Predicated region
    $region37: #{tpu_custom_call.1} parent=5 // pred_check
      %p1484 = pneg %p1483
    $region38: #{tpu_custom_call.1} parent=5 // pred_check_branch
      %1486 = sbr.rel (%p1484) target = $region40
    $region39: #{tpu_custom_call.1} parent=5 // pred_region
      %s1487 = ssub.s32 %s9, 2
      // Predicated region
      $region41: #{tpu_custom_call.1} parent=39 // pred_check
        %p1488 = pneg %p122
      $region42: #{tpu_custom_call.1} parent=39 // pred_check_branch
        %1490 = sbr.rel (%p1488) target = $region44
      $region43: #{tpu_custom_call.1} parent=39 // pred_region
        %s1491 = smul.u32 32, %s21
        %p1492 = scmp.lt.s32.totalorder %s20, 1
        %s1493 = scalar_select %p1492, %s20, 1
        %p1494 = scmp.lt.s32.totalorder %s1491, 31
        %s1495 = scalar_select %p1494, %s1491, 31
        %s1496 = smul.addr %s1493, 32
        %s1497 = sadd.s32 %s1495, %s1496
        %s1498 = smul.addr %s1497, 4
        %s1499 = scalar_lea.vmem %s3, %s1498
      $region44: #{tpu_custom_call.1} parent=39 // pred_fallthru
        _
    $region40: #{tpu_custom_call.1} parent=5 // pred_fallthru
      _
  $region6: #{tpu_custom_call.1} parent=0 // loop_footer
    %s13 = sadd.s32 1, %s9
  $region7: #{tpu_custom_call.1} parent=0 // loop_footer_branch
    %8 = sbr.rel target = $region3
  $region8: #{tpu_custom_call.1} parent=0 // loop_exit
    _

</llo_original>
